<compile_context>
chip_gen: v7x
topology: tpu7x:2x2x1
jax: 0.10.0
libtpu: 0.0.40
codegen_flags: <defaults>
</compile_context>

<pallas_src>
import functools

import jax
import jax.numpy as jnp
from jax.experimental import pallas as pl
from jax.experimental.pallas import tpu as pltpu


# ----------------------------------------------------------------------------- kernel

def _group_agg_kernel(mem_ref, euvr_ref, wmem_ref, wr1_ref, wdd_ref, v_ref, out_ref,
                      *, G, Mp, Np, D, m_true, n_true):
    """One grid step processes G groups.

    mem_ref  : (G*Mp, D)  bf16  member embeddings (flattened groups, M padded to Mp)
    euvr_ref : (G*Np, 2D) bf16  [history item emb | history rating emb] (N padded to Np)
    wmem_ref : (D, 2D)    bf16  [ge_w1 | att1b]   (fused member projection)
    wr1_ref  : (2D, D)    bf16  [wr1a ; wr1b]     (fused w_r1)
    wdd_ref  : (3, D, D)  bf16  [wr2_w, att1a, att2_w]
    v_ref    : (8, D)     f32   [ge_b1, ge_w2_row, wr1_b, wr2_b, att1_b, att2_b, att3_row, 0]
    out_ref  : (1, G, D)  f32
    """
    f32, bf16 = jnp.float32, jnp.bfloat16

    vecs = v_ref[...]                                    # (8, D) f32
    ge_b1, ge_w2r = vecs[0:1], vecs[1:2]
    wr1_b, wr2_b = vecs[2:3], vecs[3:4]
    att1_b, att2_b, att3_r = vecs[4:5], vecs[5:6], vecs[6:7]

    mem2 = mem_ref[...]                                  # (G*Mp, D)  bf16
    euvr = euvr_ref[...]                                 # (G*Np, 2D) bf16

    # ---- fused member projection: [h_pre | proj_b] = mem @ [ge_w1 | att1b] ----
    hp = jnp.dot(mem2, wmem_ref[...], preferred_element_type=f32)      # (G*Mp, 2D)
    h = jnp.maximum(hp[:, :D] + ge_b1, 0.0)                            # (G*Mp, D)
    proj_b = hp[:, D:].reshape(G, Mp, D)                               # (G, Mp, D)

    # member-attention softmax (Group_Embedding weights)
    s = jnp.sum(h.reshape(G, Mp, D) * ge_w2r, axis=-1, keepdims=True)  # (G, Mp, 1)
    if m_true < Mp:
        s = jnp.where(
            jax.lax.broadcasted_iota(jnp.int32, (G, Mp, 1), 1) < m_true,
            s, -jnp.inf)
    s = s - jnp.max(s, axis=1, keepdims=True)
    se = jnp.exp(s)
    wm = se * pl.reciprocal(jnp.sum(se, axis=1, keepdims=True), approx=True)

    # grp_t = (sum_m wm_m * mem_m) @ att1b  ==  sum_m wm_m * (mem_m @ att1b)
    grp_t = jnp.sum(wm * proj_b, axis=1)                               # (G, D) f32

    # ---- o_history = relu(w_r2(relu(w_r1([e_uv ; e_r])))) ----
    x = jnp.maximum(
        jnp.dot(euvr, wr1_ref[...], preferred_element_type=f32) + wr1_b, 0.0)  # (G*Np, D)
    o = jnp.maximum(
        jnp.dot(x.astype(bf16), wdd_ref[0], preferred_element_type=f32)
        + wr2_b, 0.0)                                                          # (G*Np, D)

    # ---- attention over history items conditioned on the group embedding ----
    a = jnp.dot(o.astype(bf16), wdd_ref[1], preferred_element_type=f32)        # (G*Np, D)
    a = jnp.maximum(a.reshape(G, Np, D) + grp_t[:, None, :] + att1_b, 0.0)     # (G, Np, D)
    a = jnp.maximum(
        jnp.dot(a.reshape(G * Np, D).astype(bf16), wdd_ref[2],
                preferred_element_type=f32) + att2_b, 0.0)                     # (G*Np, D)
    logits = jnp.sum(a.reshape(G, Np, D) * att3_r, axis=-1, keepdims=True)     # (G, Np, 1)
    if n_true < Np:
        logits = jnp.where(
            jax.lax.broadcasted_iota(jnp.int32, (G, Np, 1), 1) < n_true,
            logits, -jnp.inf)
    logits = logits - jnp.max(logits, axis=1, keepdims=True)
    le = jnp.exp(logits)
    aw = le * pl.reciprocal(jnp.sum(le, axis=1, keepdims=True), approx=True)   # (G, Np, 1)

    # att_history = (o_hist^T @ att_w)^T == sum_n att_w[n] * o_hist[n]
    out_ref[0] = jnp.sum(aw * o.reshape(G, Np, D), axis=1)                     # (G, D)


# ----------------------------------------------------------------------------- wrapper

def _round_up(x, m):
    return ((x + m - 1) // m) * m


def users_sets_aggregate(e_uv, e_r, members, params, *,
                         groups_per_step=None, target_rows=2048):
    """e_uv, e_r: (B, N, D); members: (B, M, D) -> (B, D) float32."""
    B, N, D = e_uv.shape
    M = members.shape[1]
    # Softmax masking relies on >=1 valid member / history item per group.
    assert M >= 1 and N >= 1, "each group needs >=1 member and >=1 history item"

    # Pad member / history axes to sublane multiples so all in-kernel reshapes
    # between (G*rows, D) and (G, rows, D) are layout-free.
    Np = _round_up(N, 8)
    Mp = _round_up(M, 8)

    # Groups per grid step: feed the MXU >= target_rows rows per weight push, but
    # keep >= 2 grid steps when possible (v7x has 2 TensorCores; grid is sharded
    # across them via dimension_semantics=('parallel',)).
    if groups_per_step is None:
        G = max(1, target_rows // max(Np, Mp))
        G = min(G, B)
        if B >= 2:
            G = min(G, -(-B // 2))
    else:
        G = min(max(1, int(groups_per_step)), B)
    Bp = _round_up(B, G)
    n_steps = Bp // G

    def pad_flat(x, rows_p):
        b, r, d = x.shape
        x = jnp.pad(x, ((0, Bp - b), (0, rows_p - r), (0, 0)))
        return x.astype(jnp.bfloat16).reshape(Bp * rows_p, d)

    mem_flat = pad_flat(members, Mp)                                   # (Bp*Mp, D)  bf16
    euvr_flat = pad_flat(jnp.concatenate([e_uv, e_r], axis=-1), Np)    # (Bp*Np, 2D) bf16

    # Fused / stacked bf16 weight slabs (MXU operands) + one f32 bias/vector slab.
    w_mem = jnp.concatenate([params["ge_w1"], params["att1b"]], axis=1).astype(jnp.bfloat16)
    w_r1 = jnp.concatenate([params["wr1a"], params["wr1b"]], axis=0).astype(jnp.bfloat16)
    w_dd = jnp.stack([params["wr2_w"], params["att1a"], params["att2_w"]]).astype(jnp.bfloat16)
    vec_stack = jnp.concatenate([
        params["ge_b1"], params["ge_w2"].T,
        params["wr1_bias"], params["wr2_bias"],
        params["att1_bias"], params["att2_bias"],
        params["att3_w"].T,
        jnp.zeros((1, D), jnp.float32),
    ], axis=0).astype(jnp.float32)                                     # (8, D)
    # NOTE: ge_b2 / att3 bias shift every softmax logit uniformly -> cancel exactly.

    kernel = functools.partial(_group_agg_kernel, G=G, Mp=Mp, Np=Np, D=D,
                               m_true=M, n_true=N)

    # VMEM budget: double-buffered bf16 inputs + f32 output block + weight slabs +
    # headroom for f32 intermediates.  Cap at min(32 MiB, physical/2): v7x has only
    # 64 MiB per TensorCore, so never request the 48 MiB the old version asked for.
    step_bytes = (2 * (G * Mp * D + G * Np * 2 * D) * 2
                  + 2 * G * D * 4
                  + 2 * (7 * D * D * 2 + 8 * D * 4)
                  + 8 * G * max(Np, Mp) * 2 * D * 4)
    try:
        phys_vmem = pltpu.get_tpu_info().vmem_capacity_bytes
    except Exception:                      # conservative fallback = v7x per-TC VMEM
        phys_vmem = 64 << 20
    vmem_limit = int(min(32 << 20, phys_vmem // 2, max(8 << 20, 2 * step_bytes)))

    out = pl.pallas_call(
        kernel,
        out_shape=jax.ShapeDtypeStruct((n_steps, G, D), jnp.float32),
        grid_spec=pltpu.PrefetchScalarGridSpec(
            num_scalar_prefetch=0,
            grid=(n_steps,),
            in_specs=[
                pl.BlockSpec((G * Mp, D), lambda i: (i, 0)),
                pl.BlockSpec((G * Np, 2 * D), lambda i: (i, 0)),
                pl.BlockSpec((D, 2 * D), lambda i: (0, 0)),
                pl.BlockSpec((2 * D, D), lambda i: (0, 0)),
                pl.BlockSpec((3, D, D), lambda i: (0, 0, 0)),
                pl.BlockSpec((8, D), lambda i: (0, 0)),
            ],
            out_specs=pl.BlockSpec((1, G, D), lambda i: (i, 0, 0)),
        ),
        compiler_params=pltpu.CompilerParams(
            dimension_semantics=("parallel",),
            vmem_limit_bytes=vmem_limit),
    )(mem_flat, euvr_flat, w_mem, w_r1, w_dd, vec_stack)
    return out.reshape(Bp, D)[:B]


# ----------------------------------------------------------------------------- params / reference

def init_params(key, D):
    ks = jax.random.split(key, 12)

    def lin(k, fan_in, shape):
        return (jax.random.normal(k, shape, jnp.float32) / jnp.sqrt(fan_in)).astype(jnp.float32)

    return dict(
        ge_w1=lin(ks[0], D, (D, D)), ge_b1=jnp.zeros((1, D), jnp.float32),
        ge_w2=lin(ks[1], D, (D, 1)), ge_b2=jnp.zeros((1, 1), jnp.float32),
        wr1a=lin(ks[2], 2 * D, (D, D)), wr1b=lin(ks[3], 2 * D, (D, D)),
        wr1_bias=lin(ks[4], 2 * D, (1, D)),
        wr2_w=lin(ks[5], D, (D, D)), wr2_bias=lin(ks[6], D, (1, D)),
        att1a=lin(ks[7], 2 * D, (D, D)), att1b=lin(ks[8], 2 * D, (D, D)),
        att1_bias=lin(ks[9], 2 * D, (1, D)),
        att2_w=lin(ks[10], D, (D, D)), att2_bias=jnp.zeros((1, D), jnp.float32),
        att3_w=lin(ks[11], D, (D, 1)), att3_bias=jnp.zeros((1, 1), jnp.float32),
    )


def reference(e_uv, e_r, members, p, *, matmul_dtype=jnp.float32):
    """Pure-JAX reference matching the PyTorch forward (eval mode).

    With matmul_dtype=float32 this is the exact f32 module semantics.  With
    matmul_dtype=bfloat16 the MXU operands are quantized like the kernel
    (f32 accumulation / f32 softmax) — the kernel additionally fuses the
    group-embedding @ att1b product, so the bf16 comparison uses a slightly
    wider tolerance than before.
    """
    f32 = jnp.float32
    c = lambda t: t.astype(matmul_dtype)
    q = lambda t: t.astype(matmul_dtype).astype(f32)

    def one(euv, er, mem):
        memq = q(mem)
        h = jax.nn.relu(jnp.dot(c(memq), c(p["ge_w1"]), preferred_element_type=f32) + p["ge_b1"])
        s = h @ p["ge_w2"] + p["ge_b2"]
        wm = jax.nn.softmax(s, axis=0)
        grp = (wm * memq).sum(0, keepdims=True)
        x = jax.nn.relu(jnp.dot(c(euv), c(p["wr1a"]), preferred_element_type=f32)
                        + jnp.dot(c(er), c(p["wr1b"]), preferred_element_type=f32)
                        + p["wr1_bias"])
        o = jax.nn.relu(jnp.dot(c(x), c(p["wr2_w"]), preferred_element_type=f32) + p["wr2_bias"])
        a = jax.nn.relu(jnp.dot(c(o), c(p["att1a"]), preferred_element_type=f32)
                        + jnp.dot(c(grp), c(p["att1b"]), preferred_element_type=f32)
                        + p["att1_bias"])
        a = jax.nn.relu(jnp.dot(c(a), c(p["att2_w"]), preferred_element_type=f32) + p["att2_bias"])
        logits = a @ p["att3_w"] + p["att3_bias"]
        aw = jax.nn.softmax(logits, axis=0)
        return (aw * o).sum(0)

    return jax.vmap(one)(e_uv, e_r, members)


# ----------------------------------------------------------------------------- demo

if __name__ == "__main__":
    key = jax.random.PRNGKey(0)
    B, N, M, D = 6, 10, 4, 32          # groups, history length, members/group, embed_dim
    num_items, num_ratings, num_users = 20, 5, 12

    k_v, k_r, k_u, k_p, k_hu, k_hr, k_n = jax.random.split(key, 7)
    v2e = jax.random.normal(k_v, (num_items, D), jnp.float32)
    r2e = jax.random.normal(k_r, (num_ratings, D), jnp.float32)
    u2e = jax.random.normal(k_u, (num_users, D), jnp.float32)
    history_u = jax.random.randint(k_hu, (B, N), 0, num_items)
    history_r = jax.random.randint(k_hr, (B, N), 0, num_ratings)
    nodes = jax.random.randint(k_n, (B, M), 0, num_users)

    # Glue (embedding-table gathers == torch `weight[idx]`) stays in plain JAX.
    e_uv = v2e[history_u]     # (B, N, D)
    e_r = r2e[history_r]      # (B, N, D)
    members = u2e[nodes]      # (B, M, D)

    params = init_params(k_p, D)

    # Default path: auto G keeps n_steps >= 2 (multi-step, megacore-friendly grid).
    out = users_sets_aggregate(e_uv, e_r, members, params)
    out = jax.block_until_ready(out)
    assert out.shape == (B, D)

    ref_bf16 = reference(e_uv, e_r, members, params, matmul_dtype=jnp.bfloat16)
    ref_f32 = reference(e_uv, e_r, members, params)
    assert jnp.allclose(out, ref_bf16, atol=1e-2, rtol=1e-2), "mismatch vs bf16-quantized reference"
    assert jnp.allclose(out, ref_f32, atol=5e-2, rtol=5e-2), "mismatch vs exact f32 reference"

    # Exercise the group-padding path (B % G != 0) as well.
    out2 = users_sets_aggregate(e_uv, e_r, members, params, groups_per_step=4)
    out2 = jax.block_until_ready(out2)
    assert out2.shape == (B, D)
    assert jnp.allclose(out2, ref_bf16, atol=1e-2, rtol=1e-2), "mismatch (padded-group path)"

    print("KERNEL_OK")
</pallas_src>

<mosaic_0001>
module attributes {stable_mosaic.version = 11 : i64} {
  func.func @_group_agg_kernel(%arg0: i32, %arg1: memref<24x32xbf16, #tpu.memory_space<vmem>>, %arg2: memref<48x64xbf16, #tpu.memory_space<vmem>>, %arg3: memref<32x64xbf16, #tpu.memory_space<vmem>>, %arg4: memref<64x32xbf16, #tpu.memory_space<vmem>>, %arg5: memref<3x32x32xbf16, #tpu.memory_space<vmem>>, %arg6: memref<8x32xf32, #tpu.memory_space<vmem>>, %arg7: memref<1x3x32xf32, #tpu.memory_space<vmem>>) attributes {dimension_semantics = [#tpu.dimension_semantics<parallel>], iteration_bounds = array<i64: 2>, scalar_prefetch = 0 : i64, scratch_operands = 0 : i64, tpu.core_type = #tpu.core_type<tc>, window_params = [{transform_indices = @transform_0, window_bounds = array<i64: 24, 32>}, {transform_indices = @transform_1, window_bounds = array<i64: 48, 64>}, {pipeline_mode = #tpu.pipeline_mode<synchronous>, transform_indices = @transform_2, window_bounds = array<i64: 32, 64>}, {pipeline_mode = #tpu.pipeline_mode<synchronous>, transform_indices = @transform_3, window_bounds = array<i64: 64, 32>}, {pipeline_mode = #tpu.pipeline_mode<synchronous>, transform_indices = @transform_4, window_bounds = array<i64: 3, 32, 32>}, {pipeline_mode = #tpu.pipeline_mode<synchronous>, transform_indices = @transform_5, window_bounds = array<i64: 8, 32>}, {transform_indices = @transform_6, window_bounds = array<i64: 1, 3, 32>}]} {
    %c0 = arith.constant 0 : index
    %c0_0 = arith.constant 0 : index
    %0 = vector.load %arg6[%c0, %c0_0] : memref<8x32xf32, #tpu.memory_space<vmem>>, vector<8x32xf32>
    %1 = vector.extract_strided_slice %0 {offsets = [0, 0], sizes = [1, 32], strides = [1, 1]} : vector<8x32xf32> to vector<1x32xf32>
    %2 = vector.extract_strided_slice %0 {offsets = [1, 0], sizes = [1, 32], strides = [1, 1]} : vector<8x32xf32> to vector<1x32xf32>
    %3 = vector.extract_strided_slice %0 {offsets = [2, 0], sizes = [1, 32], strides = [1, 1]} : vector<8x32xf32> to vector<1x32xf32>
    %4 = vector.extract_strided_slice %0 {offsets = [3, 0], sizes = [1, 32], strides = [1, 1]} : vector<8x32xf32> to vector<1x32xf32>
    %5 = vector.extract_strided_slice %0 {offsets = [4, 0], sizes = [1, 32], strides = [1, 1]} : vector<8x32xf32> to vector<1x32xf32>
    %6 = vector.extract_strided_slice %0 {offsets = [5, 0], sizes = [1, 32], strides = [1, 1]} : vector<8x32xf32> to vector<1x32xf32>
    %7 = vector.extract_strided_slice %0 {offsets = [6, 0], sizes = [1, 32], strides = [1, 1]} : vector<8x32xf32> to vector<1x32xf32>
    %c0_1 = arith.constant 0 : index
    %c0_2 = arith.constant 0 : index
    %8 = vector.load %arg1[%c0_1, %c0_2] : memref<24x32xbf16, #tpu.memory_space<vmem>>, vector<24x32xbf16>
    %c0_3 = arith.constant 0 : index
    %c0_4 = arith.constant 0 : index
    %9 = vector.load %arg2[%c0_3, %c0_4] : memref<48x64xbf16, #tpu.memory_space<vmem>>, vector<48x64xbf16>
    %c0_5 = arith.constant 0 : index
    %c0_6 = arith.constant 0 : index
    %10 = vector.load %arg3[%c0_5, %c0_6] : memref<32x64xbf16, #tpu.memory_space<vmem>>, vector<32x64xbf16>
    %cst = arith.constant dense<0.000000e+00> : vector<24x64xf32>
    %11 = tpu.matmul %8, %10, %cst {dimension_numbers = #tpu.dot_dimension_numbers<[1], [0], [0], [1], [0, 0, 1, 1], [], []>} : vector<24x32xbf16>, vector<32x64xbf16>, vector<24x64xf32> -> vector<24x64xf32>
    %12 = vector.extract_strided_slice %11 {offsets = [0, 0], sizes = [24, 32], strides = [1, 1]} : vector<24x64xf32> to vector<24x32xf32>
    %13 = vector.broadcast %1 : vector<1x32xf32> to vector<24x32xf32>
    %14 = arith.addf %12, %13 : vector<24x32xf32>
    %cst_7 = arith.constant 0.000000e+00 : f32
    %15 = vector.broadcast %cst_7 : f32 to vector<24x32xf32>
    %16 = arith.maximumf %14, %15 : vector<24x32xf32>
    %17 = vector.extract_strided_slice %11 {offsets = [0, 32], sizes = [24, 32], strides = [1, 1]} : vector<24x64xf32> to vector<24x32xf32>
    %18 = vector.shape_cast %17 : vector<24x32xf32> to vector<3x8x32xf32>
    %19 = vector.shape_cast %16 : vector<24x32xf32> to vector<3x8x32xf32>
    %20 = vector.shape_cast %2 : vector<1x32xf32> to vector<1x1x32xf32>
    %21 = vector.broadcast %20 : vector<1x1x32xf32> to vector<3x8x32xf32>
    %22 = arith.mulf %19, %21 : vector<3x8x32xf32>
    %cst_8 = arith.constant dense<0.000000e+00> : vector<3x8xf32>
    %23 = vector.multi_reduction <add>, %22, %cst_8 [2] : vector<3x8x32xf32> to vector<3x8xf32>
    %24 = vector.shape_cast %23 : vector<3x8xf32> to vector<3x8x1xf32>
    %25 = tpu.iota {dimensions = array<i32: 1>} : vector<3x8x1xi32>
    %c4_i32 = arith.constant 4 : i32
    %26 = vector.broadcast %c4_i32 : i32 to vector<3x8x1xi32>
    %27 = arith.cmpi slt, %25, %26 : vector<3x8x1xi32>
    %cst_9 = arith.constant 0xFF800000 : f32
    %28 = vector.broadcast %cst_9 : f32 to vector<3x8x1xf32>
    %29 = arith.select %27, %24, %28 : vector<3x8x1xi1>, vector<3x8x1xf32>
    %cst_10 = arith.constant dense<0xFF800000> : vector<3x1xf32>
    %30 = vector.multi_reduction <maximumf>, %29, %cst_10 [1] : vector<3x8x1xf32> to vector<3x1xf32>
    %31 = vector.shape_cast %30 : vector<3x1xf32> to vector<3x1x1xf32>
    %32 = vector.broadcast %31 : vector<3x1x1xf32> to vector<3x8x1xf32>
    %33 = arith.subf %29, %32 : vector<3x8x1xf32>
    %34 = math.exp %33 : vector<3x8x1xf32>
    %cst_11 = arith.constant dense<0.000000e+00> : vector<3x1xf32>
    %35 = vector.multi_reduction <add>, %34, %cst_11 [1] : vector<3x8x1xf32> to vector<3x1xf32>
    %36 = vector.shape_cast %35 : vector<3x1xf32> to vector<3x1x1xf32>
    %37 = tpu.reciprocal %36 {approx = true} : vector<3x1x1xf32> -> vector<3x1x1xf32>
    %38 = vector.broadcast %37 : vector<3x1x1xf32> to vector<3x8x1xf32>
    %39 = arith.mulf %34, %38 : vector<3x8x1xf32>
    %40 = vector.broadcast %39 : vector<3x8x1xf32> to vector<3x8x32xf32>
    %41 = arith.mulf %40, %18 : vector<3x8x32xf32>
    %cst_12 = arith.constant dense<0.000000e+00> : vector<3x32xf32>
    %42 = vector.multi_reduction <add>, %41, %cst_12 [1] : vector<3x8x32xf32> to vector<3x32xf32>
    %c0_13 = arith.constant 0 : index
    %c0_14 = arith.constant 0 : index
    %43 = vector.load %arg4[%c0_13, %c0_14] : memref<64x32xbf16, #tpu.memory_space<vmem>>, vector<64x32xbf16>
    %cst_15 = arith.constant dense<0.000000e+00> : vector<48x32xf32>
    %44 = tpu.matmul %9, %43, %cst_15 {dimension_numbers = #tpu.dot_dimension_numbers<[1], [0], [0], [1], [0, 0, 1, 1], [], []>} : vector<48x64xbf16>, vector<64x32xbf16>, vector<48x32xf32> -> vector<48x32xf32>
    %45 = vector.broadcast %3 : vector<1x32xf32> to vector<48x32xf32>
    %46 = arith.addf %44, %45 : vector<48x32xf32>
    %cst_16 = arith.constant 0.000000e+00 : f32
    %47 = vector.broadcast %cst_16 : f32 to vector<48x32xf32>
    %48 = arith.maximumf %46, %47 : vector<48x32xf32>
    %49 = arith.truncf %48 : vector<48x32xf32> to vector<48x32xbf16>
    %c0_17 = arith.constant 0 : index
    %c0_18 = arith.constant 0 : index
    %c0_19 = arith.constant 0 : index
    %50 = vector.load %arg5[%c0_17, %c0_18, %c0_19] : memref<3x32x32xbf16, #tpu.memory_space<vmem>>, vector<1x32x32xbf16>
    %51 = vector.shape_cast %50 : vector<1x32x32xbf16> to vector<32x32xbf16>
    %cst_20 = arith.constant dense<0.000000e+00> : vector<48x32xf32>
    %52 = tpu.matmul %49, %51, %cst_20 {dimension_numbers = #tpu.dot_dimension_numbers<[1], [0], [0], [1], [0, 0, 1, 1], [], []>} : vector<48x32xbf16>, vector<32x32xbf16>, vector<48x32xf32> -> vector<48x32xf32>
    %53 = vector.broadcast %4 : vector<1x32xf32> to vector<48x32xf32>
    %54 = arith.addf %52, %53 : vector<48x32xf32>
    %cst_21 = arith.constant 0.000000e+00 : f32
    %55 = vector.broadcast %cst_21 : f32 to vector<48x32xf32>
    %56 = arith.maximumf %54, %55 : vector<48x32xf32>
    %57 = arith.truncf %56 : vector<48x32xf32> to vector<48x32xbf16>
    %c1 = arith.constant 1 : index
    %c0_22 = arith.constant 0 : index
    %c0_23 = arith.constant 0 : index
    %58 = vector.load %arg5[%c1, %c0_22, %c0_23] : memref<3x32x32xbf16, #tpu.memory_space<vmem>>, vector<1x32x32xbf16>
    %59 = vector.shape_cast %58 : vector<1x32x32xbf16> to vector<32x32xbf16>
    %cst_24 = arith.constant dense<0.000000e+00> : vector<48x32xf32>
    %60 = tpu.matmul %57, %59, %cst_24 {dimension_numbers = #tpu.dot_dimension_numbers<[1], [0], [0], [1], [0, 0, 1, 1], [], []>} : vector<48x32xbf16>, vector<32x32xbf16>, vector<48x32xf32> -> vector<48x32xf32>
    %61 = vector.shape_cast %60 : vector<48x32xf32> to vector<3x16x32xf32>
    %62 = vector.shape_cast %42 : vector<3x32xf32> to vector<3x1x32xf32>
    %63 = vector.broadcast %62 : vector<3x1x32xf32> to vector<3x16x32xf32>
    %64 = arith.addf %61, %63 : vector<3x16x32xf32>
    %65 = vector.shape_cast %5 : vector<1x32xf32> to vector<1x1x32xf32>
    %66 = vector.broadcast %65 : vector<1x1x32xf32> to vector<3x16x32xf32>
    %67 = arith.addf %64, %66 : vector<3x16x32xf32>
    %cst_25 = arith.constant 0.000000e+00 : f32
    %68 = vector.broadcast %cst_25 : f32 to vector<3x16x32xf32>
    %69 = arith.maximumf %67, %68 : vector<3x16x32xf32>
    %70 = vector.shape_cast %69 : vector<3x16x32xf32> to vector<48x32xf32>
    %71 = arith.truncf %70 : vector<48x32xf32> to vector<48x32xbf16>
    %c2 = arith.constant 2 : index
    %c0_26 = arith.constant 0 : index
    %c0_27 = arith.constant 0 : index
    %72 = vector.load %arg5[%c2, %c0_26, %c0_27] : memref<3x32x32xbf16, #tpu.memory_space<vmem>>, vector<1x32x32xbf16>
    %73 = vector.shape_cast %72 : vector<1x32x32xbf16> to vector<32x32xbf16>
    %cst_28 = arith.constant dense<0.000000e+00> : vector<48x32xf32>
    %74 = tpu.matmul %71, %73, %cst_28 {dimension_numbers = #tpu.dot_dimension_numbers<[1], [0], [0], [1], [0, 0, 1, 1], [], []>} : vector<48x32xbf16>, vector<32x32xbf16>, vector<48x32xf32> -> vector<48x32xf32>
    %75 = vector.broadcast %6 : vector<1x32xf32> to vector<48x32xf32>
    %76 = arith.addf %74, %75 : vector<48x32xf32>
    %cst_29 = arith.constant 0.000000e+00 : f32
    %77 = vector.broadcast %cst_29 : f32 to vector<48x32xf32>
    %78 = arith.maximumf %76, %77 : vector<48x32xf32>
    %79 = vector.shape_cast %78 : vector<48x32xf32> to vector<3x16x32xf32>
    %80 = vector.shape_cast %7 : vector<1x32xf32> to vector<1x1x32xf32>
    %81 = vector.broadcast %80 : vector<1x1x32xf32> to vector<3x16x32xf32>
    %82 = arith.mulf %79, %81 : vector<3x16x32xf32>
    %cst_30 = arith.constant dense<0.000000e+00> : vector<3x16xf32>
    %83 = vector.multi_reduction <add>, %82, %cst_30 [2] : vector<3x16x32xf32> to vector<3x16xf32>
    %84 = vector.shape_cast %83 : vector<3x16xf32> to vector<3x16x1xf32>
    %85 = tpu.iota {dimensions = array<i32: 1>} : vector<3x16x1xi32>
    %c10_i32 = arith.constant 10 : i32
    %86 = vector.broadcast %c10_i32 : i32 to vector<3x16x1xi32>
    %87 = arith.cmpi slt, %85, %86 : vector<3x16x1xi32>
    %cst_31 = arith.constant 0xFF800000 : f32
    %88 = vector.broadcast %cst_31 : f32 to vector<3x16x1xf32>
    %89 = arith.select %87, %84, %88 : vector<3x16x1xi1>, vector<3x16x1xf32>
    %cst_32 = arith.constant dense<0xFF800000> : vector<3x1xf32>
    %90 = vector.multi_reduction <maximumf>, %89, %cst_32 [1] : vector<3x16x1xf32> to vector<3x1xf32>
    %91 = vector.shape_cast %90 : vector<3x1xf32> to vector<3x1x1xf32>
    %92 = vector.broadcast %91 : vector<3x1x1xf32> to vector<3x16x1xf32>
    %93 = arith.subf %89, %92 : vector<3x16x1xf32>
    %94 = math.exp %93 : vector<3x16x1xf32>
    %cst_33 = arith.constant dense<0.000000e+00> : vector<3x1xf32>
    %95 = vector.multi_reduction <add>, %94, %cst_33 [1] : vector<3x16x1xf32> to vector<3x1xf32>
    %96 = vector.shape_cast %95 : vector<3x1xf32> to vector<3x1x1xf32>
    %97 = tpu.reciprocal %96 {approx = true} : vector<3x1x1xf32> -> vector<3x1x1xf32>
    %98 = vector.broadcast %97 : vector<3x1x1xf32> to vector<3x16x1xf32>
    %99 = arith.mulf %94, %98 : vector<3x16x1xf32>
    %100 = vector.shape_cast %56 : vector<48x32xf32> to vector<3x16x32xf32>
    %101 = vector.broadcast %99 : vector<3x16x1xf32> to vector<3x16x32xf32>
    %102 = arith.mulf %101, %100 : vector<3x16x32xf32>
    %cst_34 = arith.constant dense<0.000000e+00> : vector<3x32xf32>
    %103 = vector.multi_reduction <add>, %102, %cst_34 [1] : vector<3x16x32xf32> to vector<3x32xf32>
    %c0_35 = arith.constant 0 : index
    %c0_36 = arith.constant 0 : index
    %c0_37 = arith.constant 0 : index
    %104 = vector.load %arg7[%c0_35, %c0_36, %c0_37] : memref<1x3x32xf32, #tpu.memory_space<vmem>>, vector<1x3x32xf32>
    %105 = vector.shape_cast %104 : vector<1x3x32xf32> to vector<3x32xf32>
    %106 = vector.shape_cast %103 : vector<3x32xf32> to vector<1x3x32xf32>
    tpu.vector_store %arg7[%c0_35, %c0_36, %c0_37], %106 {strides = array<i32>} : memref<1x3x32xf32, #tpu.memory_space<vmem>>, vector<1x3x32xf32>,
    return
  }
  func.func @transform_0(%arg0: i32) -> (i32, i32) {
    %c0_i32 = arith.constant 0 : i32
    %c0_i32_0 = arith.constant 0 : i32
    return %arg0, %c0_i32 : i32, i32
  }
  func.func @transform_1(%arg0: i32) -> (i32, i32) {
    %c0_i32 = arith.constant 0 : i32
    %c0_i32_0 = arith.constant 0 : i32
    return %arg0, %c0_i32 : i32, i32
  }
  func.func @transform_2(%arg0: i32) -> (i32, i32) {
    %c0_i32 = arith.constant 0 : i32
    %c0_i32_0 = arith.constant 0 : i32
    %c0_i32_1 = arith.constant 0 : i32
    return %c0_i32, %c0_i32_0 : i32, i32
  }
  func.func @transform_3(%arg0: i32) -> (i32, i32) {
    %c0_i32 = arith.constant 0 : i32
    %c0_i32_0 = arith.constant 0 : i32
    %c0_i32_1 = arith.constant 0 : i32
    return %c0_i32, %c0_i32_0 : i32, i32
  }
  func.func @transform_4(%arg0: i32) -> (i32, i32, i32) {
    %c0_i32 = arith.constant 0 : i32
    %c0_i32_0 = arith.constant 0 : i32
    %c0_i32_1 = arith.constant 0 : i32
    %c0_i32_2 = arith.constant 0 : i32
    return %c0_i32, %c0_i32_0, %c0_i32_1 : i32, i32, i32
  }
  func.func @transform_5(%arg0: i32) -> (i32, i32) {
    %c0_i32 = arith.constant 0 : i32
    %c0_i32_0 = arith.constant 0 : i32
    %c0_i32_1 = arith.constant 0 : i32
    return %c0_i32, %c0_i32_0 : i32, i32
  }
  func.func @transform_6(%arg0: i32) -> (i32, i32, i32) {
    %c0_i32 = arith.constant 0 : i32
    %c0_i32_0 = arith.constant 0 : i32
    %c0_i32_1 = arith.constant 0 : i32
    return %arg0, %c0_i32, %c0_i32_0 : i32, i32, i32
  }
}

</mosaic_0001>

<llo_original>
// kernel: tpu_custom_call.1
$region0: #{tpu_custom_call.1}
  #allocation0 [shape = 'u32[]', space=smem, size = 0x4, offset = 0x4, fixed_abs, tag = 'smem constant byte address 0x4 - core index']
  #allocation1 [shape = 'u32[144,128]{1,0:T(1,128)}', space=vmem, size = 0x12000, scoped, tag = 'internal scratch']
  %s0 = inlined_call_operand.vmem [shape: bf16[48,32], index: 0, kind: input, shape index: {}]
  %s1 = inlined_call_operand.vmem [shape: bf16[96,64], index: 1, kind: input, shape index: {}]
  %s2 = inlined_call_operand.vmem [shape: bf16[32,64], index: 2, kind: input, shape index: {}]
  %s3 = inlined_call_operand.vmem [shape: bf16[64,32], index: 3, kind: input, shape index: {}]
  %s4 = inlined_call_operand.vmem [shape: bf16[3,32,32], index: 4, kind: input, shape index: {}]
  %s5 = inlined_call_operand.vmem [shape: f32[8,32], index: 5, kind: input, shape index: {}]
  %s6 = inlined_call_operand.vmem [shape: f32[2,3,32], index: 6, kind: output, shape index: {}]
  %s7 = sld [smem:[#allocation0]]
  $region57: #{tpu_custom_call.1} parent=0
    _
  %s9 = ssub.s32 1, %s7
  %s10 = scalar_select 0, %s9, %s7
  loop: start=0, step=1, limit=4
  $region2: #{tpu_custom_call.1} parent=0 // loop_pre_header
    _
  $region3: #{tpu_custom_call.1} parent=0 // loop_header
    %s12 = sphi 0, %s16
    %p13 = scmp.ge.s32.totalorder %s12, 4
    %s22 = sphi 0, %s24
    %s25 = sphi 0, %s22
    %s26 = sphi 0, %s25
    %s42 = sphi 0, %s26
    %s48 = sphi 0, %s50
    %s51 = sphi 0, %s48
    %s52 = sphi 0, %s51
    %s68 = sphi 0, %s52
    %s72 = sphi 0, %s72
    %s74 = sphi 0, %s72
    %s75 = sphi 0, %s74
    %s89 = sphi 0, %s75
    %s93 = sphi 0, %s93
    %s95 = sphi 0, %s93
    %s96 = sphi 0, %s95
    %s110 = sphi 0, %s96
    %s114 = sphi 0, %s114
    %s116 = sphi 0, %s114
    %s117 = sphi 0, %s116
    %s131 = sphi 0, %s117
    %s135 = sphi 0, %s135
    %s137 = sphi 0, %s135
    %s138 = sphi 0, %s137
    %s152 = sphi 0, %s138
    %s158 = sphi 0, %s160
    %s161 = sphi 0, %s158
    %s162 = sphi 0, %s161
    %s178 = sphi 0, %s162
  $region4: #{tpu_custom_call.1} parent=0 // loop_header_branch
    %15 = sbr.rel (%p13) target = $region8
  $region5: #{tpu_custom_call.1} parent=0 // loop_body
    %s17 = ssub.s32 %s12, 1
    %s18 = ssub.s32 %s12, 2
    %s19 = sadd.s32 %s12, 1
    %s20 = ssub.s32 %s12, %s19
    %p21 = scmp.eq.s32.totalorder %s20, 0
    %s23 = sadd.s32 %s22, 1
    %s24 = scalar_select %p21, %s22, %s23
    %p27 = pneg %p21
    %p28 = scmp.eq.s32.totalorder %s12, 1
    %p29 = por %p27, %p28
    %p30 = scmp.ne.s32.totalorder %s22, %s25
    %p31 = scmp.eq.s32.totalorder %s12, 0
    %p32 = por %p30, %p31
    %p33 = scmp.ne.s32.totalorder %s22, %s25
    %p34 = scmp.eq.s32.totalorder %s17, 1
    %p35 = por %p33, %p34
    %p36 = scmp.ne.s32.totalorder %s25, %s26
    %p37 = scmp.eq.s32.totalorder %s17, 0
    %p38 = por %p36, %p37
    %p39 = scmp.ne.s32.totalorder %s25, %s26
    %p40 = scmp.eq.s32.totalorder %s18, 1
    %p41 = por %p39, %p40
    %p43 = scmp.ne.s32.totalorder %s26, %s42
    %p44 = scmp.eq.s32.totalorder %s18, 0
    %p45 = por %p43, %p44
    %s46 = ssub.s32 %s12, %s19
    %p47 = scmp.eq.s32.totalorder %s46, 0
    %s49 = sadd.s32 %s48, 1
    %s50 = scalar_select %p47, %s48, %s49
    %p53 = pneg %p47
    %p54 = scmp.eq.s32.totalorder %s12, 1
    %p55 = por %p53, %p54
    %p56 = scmp.ne.s32.totalorder %s48, %s51
    %p57 = scmp.eq.s32.totalorder %s12, 0
    %p58 = por %p56, %p57
    %p59 = scmp.ne.s32.totalorder %s48, %s51
    %p60 = scmp.eq.s32.totalorder %s17, 1
    %p61 = por %p59, %p60
    %p62 = scmp.ne.s32.totalorder %s51, %s52
    %p63 = scmp.eq.s32.totalorder %s17, 0
    %p64 = por %p62, %p63
    %p65 = scmp.ne.s32.totalorder %s51, %s52
    %p66 = scmp.eq.s32.totalorder %s18, 1
    %p67 = por %p65, %p66
    %p69 = scmp.ne.s32.totalorder %s52, %s68
    %p70 = scmp.eq.s32.totalorder %s18, 0
    %p71 = por %p69, %p70
    %s73 = sadd.s32 %s72, 1
    %p76 = scmp.eq.s32.totalorder %s12, 1
    %p77 = scmp.ne.s32.totalorder %s72, %s74
    %p78 = scmp.eq.s32.totalorder %s12, 0
    %p79 = por %p77, %p78
    %p80 = scmp.ne.s32.totalorder %s72, %s74
    %p81 = scmp.eq.s32.totalorder %s17, 1
    %p82 = por %p80, %p81
    %p83 = scmp.ne.s32.totalorder %s74, %s75
    %p84 = scmp.eq.s32.totalorder %s17, 0
    %p85 = por %p83, %p84
    %p86 = scmp.ne.s32.totalorder %s74, %s75
    %p87 = scmp.eq.s32.totalorder %s18, 1
    %p88 = por %p86, %p87
    %p90 = scmp.ne.s32.totalorder %s75, %s89
    %p91 = scmp.eq.s32.totalorder %s18, 0
    %p92 = por %p90, %p91
    %s94 = sadd.s32 %s93, 1
    %p97 = scmp.eq.s32.totalorder %s12, 1
    %p98 = scmp.ne.s32.totalorder %s93, %s95
    %p99 = scmp.eq.s32.totalorder %s12, 0
    %p100 = por %p98, %p99
    %p101 = scmp.ne.s32.totalorder %s93, %s95
    %p102 = scmp.eq.s32.totalorder %s17, 1
    %p103 = por %p101, %p102
    %p104 = scmp.ne.s32.totalorder %s95, %s96
    %p105 = scmp.eq.s32.totalorder %s17, 0
    %p106 = por %p104, %p105
    %p107 = scmp.ne.s32.totalorder %s95, %s96
    %p108 = scmp.eq.s32.totalorder %s18, 1
    %p109 = por %p107, %p108
    %p111 = scmp.ne.s32.totalorder %s96, %s110
    %p112 = scmp.eq.s32.totalorder %s18, 0
    %p113 = por %p111, %p112
    %s115 = sadd.s32 %s114, 1
    %p118 = scmp.eq.s32.totalorder %s12, 1
    %p119 = scmp.ne.s32.totalorder %s114, %s116
    %p120 = scmp.eq.s32.totalorder %s12, 0
    %p121 = por %p119, %p120
    %p122 = scmp.ne.s32.totalorder %s114, %s116
    %p123 = scmp.eq.s32.totalorder %s17, 1
    %p124 = por %p122, %p123
    %p125 = scmp.ne.s32.totalorder %s116, %s117
    %p126 = scmp.eq.s32.totalorder %s17, 0
    %p127 = por %p125, %p126
    %p128 = scmp.ne.s32.totalorder %s116, %s117
    %p129 = scmp.eq.s32.totalorder %s18, 1
    %p130 = por %p128, %p129
    %p132 = scmp.ne.s32.totalorder %s117, %s131
    %p133 = scmp.eq.s32.totalorder %s18, 0
    %p134 = por %p132, %p133
    %s136 = sadd.s32 %s135, 1
    %p139 = scmp.eq.s32.totalorder %s12, 1
    %p140 = scmp.ne.s32.totalorder %s135, %s137
    %p141 = scmp.eq.s32.totalorder %s12, 0
    %p142 = por %p140, %p141
    %p143 = scmp.ne.s32.totalorder %s135, %s137
    %p144 = scmp.eq.s32.totalorder %s17, 1
    %p145 = por %p143, %p144
    %p146 = scmp.ne.s32.totalorder %s137, %s138
    %p147 = scmp.eq.s32.totalorder %s17, 0
    %p148 = por %p146, %p147
    %p149 = scmp.ne.s32.totalorder %s137, %s138
    %p150 = scmp.eq.s32.totalorder %s18, 1
    %p151 = por %p149, %p150
    %p153 = scmp.ne.s32.totalorder %s138, %s152
    %p154 = scmp.eq.s32.totalorder %s18, 0
    %p155 = por %p153, %p154
    %s156 = ssub.s32 %s12, %s19
    %p157 = scmp.eq.s32.totalorder %s156, 0
    %s159 = sadd.s32 %s158, 1
    %s160 = scalar_select %p157, %s158, %s159
    %p163 = pneg %p157
    %p164 = scmp.eq.s32.totalorder %s12, 1
    %p165 = por %p163, %p164
    %p166 = scmp.ne.s32.totalorder %s158, %s161
    %p167 = scmp.eq.s32.totalorder %s12, 0
    %p168 = por %p166, %p167
    %p169 = scmp.ne.s32.totalorder %s158, %s161
    %p170 = scmp.eq.s32.totalorder %s17, 1
    %p171 = por %p169, %p170
    %p172 = scmp.ne.s32.totalorder %s161, %s162
    %p173 = scmp.eq.s32.totalorder %s17, 0
    %p174 = por %p172, %p173
    %p175 = scmp.ne.s32.totalorder %s161, %s162
    %p176 = scmp.eq.s32.totalorder %s18, 1
    %p177 = por %p175, %p176
    %p179 = scmp.ne.s32.totalorder %s162, %s178
    %p180 = scmp.eq.s32.totalorder %s18, 0
    %p181 = por %p179, %p180
    %p182 = scmp.le.s32.totalorder 1, %s12
    %p183 = scmp.lt.s32.totalorder %s12, 3
    %p184 = pnand %p182, %p183
    %p185 = pneg %p184
    // Predicated region
    $region9: #{tpu_custom_call.1} parent=5 // pred_check
      _
    $region10: #{tpu_custom_call.1} parent=5 // pred_check_branch
      %187 = sbr.rel (%p184) target = $region12
    $region11: #{tpu_custom_call.1} parent=5 // pred_region
      %s188 = ssub.s32 %s12, 1
      // Predicated region
      $region13: #{tpu_custom_call.1} parent=11 // pred_check
        %p189 = pneg %p85
      $region14: #{tpu_custom_call.1} parent=11 // pred_check_branch
        %191 = sbr.rel (%p189) target = $region16
      $region15: #{tpu_custom_call.1} parent=11 // pred_region
        _
      $region16: #{tpu_custom_call.1} parent=11 // pred_fallthru
        _
      // Predicated region
      $region17: #{tpu_custom_call.1} parent=11 // pred_check
        %p192 = pneg %p106
      $region18: #{tpu_custom_call.1} parent=11 // pred_check_branch
        %194 = sbr.rel (%p192) target = $region20
      $region19: #{tpu_custom_call.1} parent=11 // pred_region
        _
      $region20: #{tpu_custom_call.1} parent=11 // pred_fallthru
        _
      // Predicated region
      $region21: #{tpu_custom_call.1} parent=11 // pred_check
        %p195 = pneg %p127
      $region22: #{tpu_custom_call.1} parent=11 // pred_check_branch
        %197 = sbr.rel (%p195) target = $region24
      $region23: #{tpu_custom_call.1} parent=11 // pred_region
        _
      $region24: #{tpu_custom_call.1} parent=11 // pred_fallthru
        _
      // Predicated region
      $region25: #{tpu_custom_call.1} parent=11 // pred_check
        %p198 = pneg %p148
      $region26: #{tpu_custom_call.1} parent=11 // pred_check_branch
        %200 = sbr.rel (%p198) target = $region28
      $region27: #{tpu_custom_call.1} parent=11 // pred_region
        _
      $region28: #{tpu_custom_call.1} parent=11 // pred_fallthru
        _
    $region12: #{tpu_custom_call.1} parent=5 // pred_fallthru
      _
    %p201 = scmp.lt.s32.totalorder %s12, 2
    // Predicated region
    $region29: #{tpu_custom_call.1} parent=5 // pred_check
      %p202 = pneg %p201
    $region30: #{tpu_custom_call.1} parent=5 // pred_check_branch
      %204 = sbr.rel (%p202) target = $region32
    $region31: #{tpu_custom_call.1} parent=5 // pred_region
      // Predicated region
      $region33: #{tpu_custom_call.1} parent=31 // pred_check
        %p205 = pneg %p32
      $region34: #{tpu_custom_call.1} parent=31 // pred_check_branch
        %207 = sbr.rel (%p205) target = $region36
      $region35: #{tpu_custom_call.1} parent=31 // pred_region
        %s208 = smul.u32 3, %s12
        %p209 = scmp.lt.s32.totalorder %s208, 5
        %s210 = scalar_select %p209, %s208, 5
        %s211 = smul.addr %s210, 4
        %s212 = scalar_lea.vmem %s0, %s211
        %s213 = smul.u32 3, %s12
      $region36: #{tpu_custom_call.1} parent=31 // pred_fallthru
        _
      // Predicated region
      $region37: #{tpu_custom_call.1} parent=31 // pred_check
        %p214 = pneg %p58
      $region38: #{tpu_custom_call.1} parent=31 // pred_check_branch
        %216 = sbr.rel (%p214) target = $region40
      $region39: #{tpu_custom_call.1} parent=31 // pred_region
        %s217 = smul.u32 6, %s12
        %p218 = scmp.lt.s32.totalorder %s217, 11
        %s219 = scalar_select %p218, %s217, 11
        %s220 = smul.addr %s219, 4
        %s221 = scalar_lea.vmem %s1, %s220
        %s222 = smul.u32 6, %s12
      $region40: #{tpu_custom_call.1} parent=31 // pred_fallthru
        _
    $region32: #{tpu_custom_call.1} parent=5 // pred_fallthru
      _
    %p223 = scmp.le.s32.totalorder 1, %s12
    %p224 = scmp.lt.s32.totalorder %s12, 3
    %p225 = pnand %p223, %p224
    %p226 = pneg %p225
    // Predicated region
    $region41: #{tpu_custom_call.1} parent=5 // pred_check
      _
    $region42: #{tpu_custom_call.1} parent=5 // pred_check_branch
      %228 = sbr.rel (%p225) target = $region44
    $region43: #{tpu_custom_call.1} parent=5 // pred_region
      %s229 = ssub.s32 %s12, 1
      %s230 = smul.u32 3, %s17
      %p231 = scmp.lt.s32.totalorder %s230, 5
      %s232 = scalar_select %p231, %s230, 5
      %s233 = smul.addr %s232, 4
      %s234 = scalar_lea.vmem %s0, %s233
      %p235 = pneg %p38
      %p236 = pneg %p35
      %s237 = smul.u32 6, %s17
      %p238 = scmp.lt.s32.totalorder %s237, 11
      %s239 = scalar_select %p238, %s237, 11
      %s240 = smul.addr %s239, 4
      %s241 = scalar_lea.vmem %s1, %s240
      %p242 = pneg %p64
      %p243 = pneg %p61
      %p244 = pneg %p85
      %p245 = pneg %p82
      %p246 = pneg %p106
      %p247 = pneg %p103
      %p248 = pneg %p127
      %p249 = pneg %p124
      %p250 = pneg %p148
      %p251 = pneg %p145
      %p252 = pneg %p174
      %p253 = pneg %p171
      %p254 = scmp.lt.s32.totalorder %s17, 1
      %s255 = scalar_select %p254, %s17, 1
      %s256 = smul.addr %s255, 4
      %s257 = scalar_lea.vmem %s6, %s256
      %s258 = smul.u32 3, %s17
      %p259 = scmp.lt.s32.totalorder %s258, 5
      %s260 = scalar_select %p259, %s258, 5
      %s261 = smul.addr %s260, 4
      %s262 = scalar_lea.vmem %s0, %s261
      %s263 = smul.u32 3, %s17
      %s264 = smul.u32 6, %s17
      %p265 = scmp.lt.s32.totalorder %s264, 11
      %s266 = scalar_select %p265, %s264, 11
      %s267 = smul.addr %s266, 4
      %s268 = scalar_lea.vmem %s1, %s267
      %s269 = smul.u32 6, %s17
      %p270 = scmp.lt.s32.totalorder %s17, 1
      %s271 = scalar_select %p270, %s17, 1
      %s272 = smul.addr %s271, 4
      %s273 = scalar_lea.vmem %s6, %s272
      %v275 = vld [vmem:[%s5] sm:$0xff]
      %v276 = vld [vmem:[%s262] sm:$0xf]
      %v277 = vld [vmem:[%s262 + $0x4] sm:$0xf]
      %v278 = vld [vmem:[%s262 + $0x8] sm:$0xf]
      %v279 = vld [vmem:[%s268] sm:$0xf]
      %v280 = vld [vmem:[%s268 + $0x4] sm:$0xf]
      %v281 = vld [vmem:[%s268 + $0x8] sm:$0xf]
      %v282 = vld [vmem:[%s268 + $0xc] sm:$0xf]
      %v283 = vld [vmem:[%s268 + $0x10] sm:$0xf]
      %v284 = vld [vmem:[%s268 + $0x14] sm:$0xf]
      %v285 = vld [vmem:[%s2] sm:$0xf]
      %v286 = vld [vmem:[%s2 + $0x4] sm:$0xf]
      %v287 = vld [vmem:[%s2 + $0x8] sm:$0xf]
      %v288 = vld [vmem:[%s2 + $0xc] sm:$0xf]
      %v292 = vunpack.c.l.b16 %v276
      %v293 = vunpack.c.l.b16 %v277
      %v294 = vunpack.c.l.b16 %v278
      %v295 = vpack.c.b16 %v293, %v292
      %v296 = vpack.c.b16 %v294, %v294
      %v301 = vunpack.c.l.b16 %v285
      %v302 = vunpack.c.l.b16 %v286
      %v303 = vunpack.c.l.b16 %v287
      %v304 = vunpack.c.l.b16 %v288
      %v305 = vpack.c.b16 %v302, %v301
      %v306 = vpack.c.b16 %v304, %v303
      %vm309 = vcmask 261120
      %v311 = vsel %vm309, %v295, 0
      %v314 = vsel %vm309, %v296, 0
      %316 = vmatprep.subr.bf16.mxu0 0
      %317 = vmatpush1.bf16.msra.mxu0 %v305
      %318 = vmatprep.subr.bf16.mxu0 0
      %319 = vmatpush1.bf16.msra.mxu0 %v306
      %320 = vmatprep.subr.bf16.mxu0 0
      %321 = vmatpush1.bf16.msra.mxu0 0
      %322 = vmatprep.subr.bf16.mxu0 0
      %323 = vmatpush1.bf16.msra.mxu0 0
      %324 = vmatprep.subr.bf16.mxu0 0
      %325 = vmatpush1.bf16.msra.mxu0 0
      %326 = vmatprep.subr.bf16.mxu0 0
      %327 = vmatpush1.bf16.msra.mxu0 0
      %328 = vmatprep.subr.bf16.mxu0 0
      %329 = vmatpush1.bf16.msra.mxu0 0
      %330 = vmatprep.subr.bf16.mxu0 0
      %331 = vmatpush1.bf16.msra.mxu0 0
      %332 = vmatprep.subr.bf16.mxu0 0
      %333 = vmatpush1.bf16.msra.mxu0 0
      %334 = vmatprep.subr.bf16.mxu0 0
      %335 = vmatpush1.bf16.msra.mxu0 0
      %336 = vmatprep.subr.bf16.mxu0 0
      %337 = vmatpush1.bf16.msra.mxu0 0
      %338 = vmatprep.subr.bf16.mxu0 0
      %339 = vmatpush1.bf16.msra.mxu0 0
      %340 = vmatprep.subr.bf16.mxu0 0
      %341 = vmatpush1.bf16.msra.mxu0 0
      %342 = vmatprep.subr.bf16.mxu0 0
      %343 = vmatpush1.bf16.msra.mxu0 0
      %344 = vmatprep.subr.bf16.mxu0 0
      %345 = vmatpush1.bf16.msra.mxu0 0
      %346 = vmatprep.subr.bf16.mxu0 0
      %347 = vmatpush1.bf16.msra.mxu0 0
      %348 = vmatprep.mubr.bf16.mxu0 0
      %349 = vmatmul.mubr.bf16.gmra.mrb[0].mxu0 %v311
      %v350 = vpop.f32.mrb[0].mxu0
      %v351 = vadd.f32 0.0, %v350
      %v352 = vpop.f32.mrb[0].mxu0
      %v353 = vpop.f32.mrb[0].mxu0
      %v354 = vadd.f32 0.0, %v353
      %v355 = vpop.f32.mrb[0].mxu0
      %356 = vmatprep.mubr.bf16.mxu0 0
      %357 = vmatmul.mubr.bf16.gmra.mrb[0].mxu0 %v314
      %v358 = vpop.f32.mrb[0].mxu0
      %v359 = vadd.f32 0.0, %v358
      %v360 = vpop.f32.mrb[0].mxu0
      %v361 = vpop.f32.mrb[0].mxu0
      %v362 = vpop.f32.mrb[0].mxu0
      %363 = vdwg.mxu0
      %v364 = vlaneseq
      %v365 = vshrl.u32 %v364, 7
      %v366 = vsub.s32 0, %v365
      %v367 = vrot.slane %v275, %v366
      %v368 = vadd.f32 %v351, %v367
      %v369 = vadd.f32 %v354, %v367
      %v370 = vadd.f32 %v359, %v367
      %v371 = vmax.f32 %v368, 0.0
      %v372 = vmax.f32 %v369, 0.0
      %v373 = vmax.f32 %v370, 0.0
      %v374 = vlaneseq
      %v375 = vshrl.u32 %v374, 7
      %v376 = vsub.s32 1, %v375
      %v377 = vrot.slane %v275, %v376
      %v378 = vmul.f32 %v371, %v377
      %v379 = vmul.f32 %v372, %v377
      %v380 = vmul.f32 %v373, %v377
      %v381 = vsel %vm309, %v378, 0.0
      %382 = vadd.xlane.f32.xlu0 %v381
      %v383 = vpop.xlane.xlu0 %382
      %v384 = vsel %vm309, %v379, 0.0
      %385 = vadd.xlane.f32.xlu0 %v384
      %v386 = vpop.xlane.xlu0 %385
      %v387 = vsel %vm309, %v380, 0.0
      %388 = vadd.xlane.f32.xlu0 %v387
      %v389 = vpop.xlane.xlu0 %388
      %v390 = vlaneseq
      %v391 = vshrl.u32 %v390, 7
      %vm392 = vcmp.lt.s32.totalorder %v391, 4
      %v393 = vsel %vm392, %v383, -inf
      %v394 = vsel %vm392, %v386, -inf
      %v395 = vsel %vm392, %v389, -inf
      %v396 = vrot.slane %v393, 4
      %v397 = vmax.f32 %v393, %v396
      %v398 = vrot.slane %v397, 2
      %v399 = vmax.f32 %v397, %v398
      %v400 = vrot.slane %v399, 1
      %v401 = vmax.f32 %v399, %v400
      %v402 = vrot.slane %v394, 4
      %v403 = vmax.f32 %v394, %v402
      %v404 = vrot.slane %v403, 2
      %v405 = vmax.f32 %v403, %v404
      %v406 = vrot.slane %v405, 1
      %v407 = vmax.f32 %v405, %v406
      %v408 = vrot.slane %v395, 4
      %v409 = vmax.f32 %v395, %v408
      %v410 = vrot.slane %v409, 2
      %v411 = vmax.f32 %v409, %v410
      %v412 = vrot.slane %v411, 1
      %v413 = vmax.f32 %v411, %v412
      %v414 = vsub.f32 %v393, %v401
      %v415 = vsub.f32 %v394, %v407
      %v416 = vsub.f32 %v395, %v413
      %v417 = vmul.f32 %v414, 1.442695
      %v418 = vpow.pop %v417
      %v419 = vmul.f32 %v415, 1.442695
      %v420 = vpow.pop %v419
      %v421 = vmul.f32 %v416, 1.442695
      %v422 = vpow.pop %v421
      %v423 = vrot.slane %v418, 4
      %v424 = vadd.f32 %v418, %v423
      %v425 = vrot.slane %v424, 2
      %v426 = vadd.f32 %v424, %v425
      %v427 = vrot.slane %v426, 1
      %v428 = vadd.f32 %v426, %v427
      %v429 = vrot.slane %v420, 4
      %v430 = vadd.f32 %v420, %v429
      %v431 = vrot.slane %v430, 2
      %v432 = vadd.f32 %v430, %v431
      %v433 = vrot.slane %v432, 1
      %v434 = vadd.f32 %v432, %v433
      %v435 = vrot.slane %v422, 4
      %v436 = vadd.f32 %v422, %v435
      %v437 = vrot.slane %v436, 2
      %v438 = vadd.f32 %v436, %v437
      %v439 = vrot.slane %v438, 1
      %v440 = vadd.f32 %v438, %v439
      %v441 = vrcp.pop %v428
      %v442 = vrcp.pop %v434
      %v443 = vrcp.pop %v440
      %v444 = vmul.f32 %v418, %v441
      %v445 = vmul.f32 %v420, %v442
      %v446 = vmul.f32 %v422, %v443
      %v447 = vmul.f32 %v444, %v351
      %v448 = vmul.f32 %v445, %v354
      %v449 = vmul.f32 %v446, %v359
      %vm450 = vcmask 523520
      %v451 = vsel %vm450, %v447, 0.0
      %v452 = vrot.slane %v451, 4
      %v453 = vadd.f32 %v451, %v452
      %v454 = vrot.slane %v453, 2
      %v455 = vadd.f32 %v453, %v454
      %v456 = vrot.slane %v455, 1
      %v457 = vadd.f32 %v455, %v456
      %v458 = vsel %vm450, %v448, 0.0
      %v459 = vrot.slane %v458, 4
      %v460 = vadd.f32 %v458, %v459
      %v461 = vrot.slane %v460, 2
      %v462 = vadd.f32 %v460, %v461
      %v463 = vrot.slane %v462, 1
      %v464 = vadd.f32 %v462, %v463
      %v465 = vsel %vm450, %v449, 0.0
      %v466 = vrot.slane %v465, 4
      %v467 = vadd.f32 %v465, %v466
      %v468 = vrot.slane %v467, 2
      %v469 = vadd.f32 %v467, %v468
      %v470 = vrot.slane %v469, 1
      %v471 = vadd.f32 %v469, %v470
      %v472 = vld [vmem:[%s3] sm:$0xf]
      %v473 = vld [vmem:[%s3 + $0x4] sm:$0xf]
      %v474 = vld [vmem:[%s3 + $0x8] sm:$0xf]
      %v475 = vld [vmem:[%s3 + $0xc] sm:$0xf]
      %v476 = vld [vmem:[%s3 + $0x10] sm:$0xf]
      %v477 = vld [vmem:[%s3 + $0x14] sm:$0xf]
      %v478 = vld [vmem:[%s3 + $0x18] sm:$0xf]
      %v479 = vld [vmem:[%s3 + $0x1c] sm:$0xf]
      %v480 = vlaneseq
      %v481 = vshrl.u32 %v480, 7
      %v482 = vsub.s32 2, %v481
      %v483 = vrot.slane %v275, %v482
      %v490 = vunpack.c.l.b16 %v279
      %v491 = vunpack.c.l.b16 %v280
      %v492 = vunpack.c.l.b16 %v281
      %v493 = vunpack.c.l.b16 %v282
      %v494 = vunpack.c.l.b16 %v283
      %v495 = vunpack.c.l.b16 %v284
      %v496 = vpack.c.b16 %v491, %v490
      %v497 = vpack.c.b16 %v493, %v492
      %v498 = vpack.c.b16 %v495, %v494
      %v507 = vunpack.c.l.b16 %v472
      %v508 = vunpack.c.l.b16 %v473
      %v509 = vunpack.c.l.b16 %v474
      %v510 = vunpack.c.l.b16 %v475
      %v511 = vunpack.c.l.b16 %v476
      %v512 = vunpack.c.l.b16 %v477
      %v513 = vunpack.c.l.b16 %v478
      %v514 = vunpack.c.l.b16 %v479
      %v515 = vpack.c.b16 %v508, %v507
      %v516 = vpack.c.b16 %v510, %v509
      %v517 = vpack.c.b16 %v512, %v511
      %v518 = vpack.c.b16 %v514, %v513
      %vm523 = vcmask 523264
      %v525 = vsel %vm523, %v496, 0
      %v528 = vsel %vm523, %v497, 0
      %v531 = vsel %vm523, %v498, 0
      %533 = vmatprep.subr.bf16.mxu0 0
      %534 = vmatpush1.bf16.msra.mxu0 %v515
      %535 = vmatprep.subr.bf16.mxu0 0
      %536 = vmatpush1.bf16.msra.mxu0 %v516
      %537 = vmatprep.subr.bf16.mxu0 0
      %538 = vmatpush1.bf16.msra.mxu0 %v517
      %539 = vmatprep.subr.bf16.mxu0 0
      %540 = vmatpush1.bf16.msra.mxu0 %v518
      %541 = vmatprep.subr.bf16.mxu0 0
      %542 = vmatpush1.bf16.msra.mxu0 0
      %543 = vmatprep.subr.bf16.mxu0 0
      %544 = vmatpush1.bf16.msra.mxu0 0
      %545 = vmatprep.subr.bf16.mxu0 0
      %546 = vmatpush1.bf16.msra.mxu0 0
      %547 = vmatprep.subr.bf16.mxu0 0
      %548 = vmatpush1.bf16.msra.mxu0 0
      %549 = vmatprep.subr.bf16.mxu0 0
      %550 = vmatpush1.bf16.msra.mxu0 0
      %551 = vmatprep.subr.bf16.mxu0 0
      %552 = vmatpush1.bf16.msra.mxu0 0
      %553 = vmatprep.subr.bf16.mxu0 0
      %554 = vmatpush1.bf16.msra.mxu0 0
      %555 = vmatprep.subr.bf16.mxu0 0
      %556 = vmatpush1.bf16.msra.mxu0 0
      %557 = vmatprep.subr.bf16.mxu0 0
      %558 = vmatpush1.bf16.msra.mxu0 0
      %559 = vmatprep.subr.bf16.mxu0 0
      %560 = vmatpush1.bf16.msra.mxu0 0
      %561 = vmatprep.subr.bf16.mxu0 0
      %562 = vmatpush1.bf16.msra.mxu0 0
      %563 = vmatprep.subr.bf16.mxu0 0
      %564 = vmatpush1.bf16.msra.mxu0 0
      %565 = vmatprep.mubr.bf16.mxu0 0
      %566 = vmatmul.mubr.bf16.gmra.mrb[0].mxu0 %v525
      %v567 = vpop.f32.mrb[0].mxu0
      %v568 = vadd.f32 %v483, %v567
      %v569 = vpop.f32.mrb[0].mxu0
      %v570 = vpop.f32.mrb[0].mxu0
      %v571 = vadd.f32 %v483, %v570
      %v572 = vpop.f32.mrb[0].mxu0
      %573 = vmatprep.mubr.bf16.mxu0 0
      %574 = vmatmul.mubr.bf16.gmra.mrb[0].mxu0 %v528
      %v575 = vpop.f32.mrb[0].mxu0
      %v576 = vadd.f32 %v483, %v575
      %v577 = vpop.f32.mrb[0].mxu0
      %v578 = vpop.f32.mrb[0].mxu0
      %v579 = vadd.f32 %v483, %v578
      %v580 = vpop.f32.mrb[0].mxu0
      %581 = vmatprep.mubr.bf16.mxu0 0
      %582 = vmatmul.mubr.bf16.gmra.mrb[0].mxu0 %v531
      %v583 = vpop.f32.mrb[0].mxu0
      %v584 = vadd.f32 %v483, %v583
      %v585 = vpop.f32.mrb[0].mxu0
      %v586 = vpop.f32.mrb[0].mxu0
      %v587 = vadd.f32 %v483, %v586
      %v588 = vpop.f32.mrb[0].mxu0
      %589 = vdwg.mxu0
      %v590 = vmax.f32 %v568, 0.0
      %v591 = vmax.f32 %v571, 0.0
      %v592 = vmax.f32 %v576, 0.0
      %v593 = vmax.f32 %v579, 0.0
      %v594 = vmax.f32 %v584, 0.0
      %v595 = vmax.f32 %v587, 0.0
      %v596 = vpack.c.bf16 %v591, %v590
      %v597 = vpack.c.bf16 %v593, %v592
      %v598 = vpack.c.bf16 %v595, %v594
      %v599 = vld [vmem:[%s4] sm:$0xf]
      %v600 = vld [vmem:[%s4 + $0x4] sm:$0xf]
      %v601 = vld [vmem:[%s4 + $0x8] sm:$0xf]
      %v602 = vld [vmem:[%s4 + $0xc] sm:$0xf]
      %v603 = vlaneseq
      %v604 = vshrl.u32 %v603, 7
      %v605 = vsub.s32 3, %v604
      %v606 = vrot.slane %v275, %v605
      %v611 = vunpack.c.l.b16 %v599
      %v612 = vunpack.c.l.b16 %v600
      %v613 = vunpack.c.l.b16 %v601
      %v614 = vunpack.c.l.b16 %v602
      %v615 = vpack.c.b16 %v612, %v611
      %v616 = vpack.c.b16 %v614, %v613
      %v620 = vsel %vm309, %v596, 0
      %v623 = vsel %vm309, %v597, 0
      %v626 = vsel %vm309, %v598, 0
      %628 = vmatprep.subr.bf16.mxu0 0
      %629 = vmatpush1.bf16.msra.mxu0 %v615
      %630 = vmatprep.subr.bf16.mxu0 0
      %631 = vmatpush1.bf16.msra.mxu0 %v616
      %632 = vmatprep.subr.bf16.mxu0 0
      %633 = vmatpush1.bf16.msra.mxu0 0
      %634 = vmatprep.subr.bf16.mxu0 0
      %635 = vmatpush1.bf16.msra.mxu0 0
      %636 = vmatprep.subr.bf16.mxu0 0
      %637 = vmatpush1.bf16.msra.mxu0 0
      %638 = vmatprep.subr.bf16.mxu0 0
      %639 = vmatpush1.bf16.msra.mxu0 0
      %640 = vmatprep.subr.bf16.mxu0 0
      %641 = vmatpush1.bf16.msra.mxu0 0
      %642 = vmatprep.subr.bf16.mxu0 0
      %643 = vmatpush1.bf16.msra.mxu0 0
      %644 = vmatprep.subr.bf16.mxu0 0
      %645 = vmatpush1.bf16.msra.mxu0 0
      %646 = vmatprep.subr.bf16.mxu0 0
      %647 = vmatpush1.bf16.msra.mxu0 0
      %648 = vmatprep.subr.bf16.mxu0 0
      %649 = vmatpush1.bf16.msra.mxu0 0
      %650 = vmatprep.subr.bf16.mxu0 0
      %651 = vmatpush1.bf16.msra.mxu0 0
      %652 = vmatprep.subr.bf16.mxu0 0
      %653 = vmatpush1.bf16.msra.mxu0 0
      %654 = vmatprep.subr.bf16.mxu0 0
      %655 = vmatpush1.bf16.msra.mxu0 0
      %656 = vmatprep.subr.bf16.mxu0 0
      %657 = vmatpush1.bf16.msra.mxu0 0
      %658 = vmatprep.subr.bf16.mxu0 0
      %659 = vmatpush1.bf16.msra.mxu0 0
      %660 = vmatprep.mubr.bf16.mxu0 0
      %661 = vmatmul.mubr.bf16.gmra.mrb[0].mxu0 %v620
      %v662 = vpop.f32.mrb[0].mxu0
      %v663 = vadd.f32 %v606, %v662
      %v664 = vpop.f32.mrb[0].mxu0
      %v665 = vpop.f32.mrb[0].mxu0
      %v666 = vadd.f32 %v606, %v665
      %v667 = vpop.f32.mrb[0].mxu0
      %668 = vmatprep.mubr.bf16.mxu0 0
      %669 = vmatmul.mubr.bf16.gmra.mrb[0].mxu0 %v623
      %v670 = vpop.f32.mrb[0].mxu0
      %v671 = vadd.f32 %v606, %v670
      %v672 = vpop.f32.mrb[0].mxu0
      %v673 = vpop.f32.mrb[0].mxu0
      %v674 = vadd.f32 %v606, %v673
      %v675 = vpop.f32.mrb[0].mxu0
      %676 = vmatprep.mubr.bf16.mxu0 0
      %677 = vmatmul.mubr.bf16.gmra.mrb[0].mxu0 %v626
      %v678 = vpop.f32.mrb[0].mxu0
      %v679 = vadd.f32 %v606, %v678
      %v680 = vpop.f32.mrb[0].mxu0
      %v681 = vpop.f32.mrb[0].mxu0
      %v682 = vadd.f32 %v606, %v681
      %v683 = vpop.f32.mrb[0].mxu0
      %684 = vdwg.mxu0
      %v685 = vmax.f32 %v663, 0.0
      %v686 = vmax.f32 %v666, 0.0
      %v687 = vmax.f32 %v671, 0.0
      %v688 = vmax.f32 %v674, 0.0
      %v689 = vmax.f32 %v679, 0.0
      %v690 = vmax.f32 %v682, 0.0
      %v691 = vpack.c.bf16 %v686, %v685
      %v692 = vpack.c.bf16 %v688, %v687
      %v693 = vpack.c.bf16 %v690, %v689
      %s694 = scalar_lea.vmem %s4, 16
      %v695 = vld [vmem:[%s694] sm:$0xf]
      %v696 = vld [vmem:[%s694 + $0x4] sm:$0xf]
      %v697 = vld [vmem:[%s694 + $0x8] sm:$0xf]
      %v698 = vld [vmem:[%s694 + $0xc] sm:$0xf]
      %v703 = vunpack.c.l.b16 %v695
      %v704 = vunpack.c.l.b16 %v696
      %v705 = vunpack.c.l.b16 %v697
      %v706 = vunpack.c.l.b16 %v698
      %v707 = vpack.c.b16 %v704, %v703
      %v708 = vpack.c.b16 %v706, %v705
      %v712 = vsel %vm309, %v691, 0
      %v715 = vsel %vm309, %v692, 0
      %v718 = vsel %vm309, %v693, 0
      %720 = vmatprep.subr.bf16.mxu0 0
      %721 = vmatpush1.bf16.msra.mxu0 %v707
      %722 = vmatprep.subr.bf16.mxu0 0
      %723 = vmatpush1.bf16.msra.mxu0 %v708
      %724 = vmatprep.subr.bf16.mxu0 0
      %725 = vmatpush1.bf16.msra.mxu0 0
      %726 = vmatprep.subr.bf16.mxu0 0
      %727 = vmatpush1.bf16.msra.mxu0 0
      %728 = vmatprep.subr.bf16.mxu0 0
      %729 = vmatpush1.bf16.msra.mxu0 0
      %730 = vmatprep.subr.bf16.mxu0 0
      %731 = vmatpush1.bf16.msra.mxu0 0
      %732 = vmatprep.subr.bf16.mxu0 0
      %733 = vmatpush1.bf16.msra.mxu0 0
      %734 = vmatprep.subr.bf16.mxu0 0
      %735 = vmatpush1.bf16.msra.mxu0 0
      %736 = vmatprep.subr.bf16.mxu0 0
      %737 = vmatpush1.bf16.msra.mxu0 0
      %738 = vmatprep.subr.bf16.mxu0 0
      %739 = vmatpush1.bf16.msra.mxu0 0
      %740 = vmatprep.subr.bf16.mxu0 0
      %741 = vmatpush1.bf16.msra.mxu0 0
      %742 = vmatprep.subr.bf16.mxu0 0
      %743 = vmatpush1.bf16.msra.mxu0 0
      %744 = vmatprep.subr.bf16.mxu0 0
      %745 = vmatpush1.bf16.msra.mxu0 0
      %746 = vmatprep.subr.bf16.mxu0 0
      %747 = vmatpush1.bf16.msra.mxu0 0
      %748 = vmatprep.subr.bf16.mxu0 0
      %749 = vmatpush1.bf16.msra.mxu0 0
      %750 = vmatprep.subr.bf16.mxu0 0
      %751 = vmatpush1.bf16.msra.mxu0 0
      %752 = vmatprep.mubr.bf16.mxu0 0
      %753 = vmatmul.mubr.bf16.gmra.mrb[0].mxu0 %v712
      %v754 = vpop.f32.mrb[0].mxu0
      %v755 = vadd.f32 0.0, %v754
      %v756 = vpop.f32.mrb[0].mxu0
      %v757 = vpop.f32.mrb[0].mxu0
      %v758 = vadd.f32 0.0, %v757
      %v759 = vpop.f32.mrb[0].mxu0
      %760 = vmatprep.mubr.bf16.mxu0 0
      %761 = vmatmul.mubr.bf16.gmra.mrb[0].mxu0 %v715
      %v762 = vpop.f32.mrb[0].mxu0
      %v763 = vadd.f32 0.0, %v762
      %v764 = vpop.f32.mrb[0].mxu0
      %v765 = vpop.f32.mrb[0].mxu0
      %v766 = vadd.f32 0.0, %v765
      %v767 = vpop.f32.mrb[0].mxu0
      %768 = vmatprep.mubr.bf16.mxu0 0
      %769 = vmatmul.mubr.bf16.gmra.mrb[0].mxu0 %v718
      %v770 = vpop.f32.mrb[0].mxu0
      %v771 = vadd.f32 0.0, %v770
      %v772 = vpop.f32.mrb[0].mxu0
      %v773 = vpop.f32.mrb[0].mxu0
      %v774 = vadd.f32 0.0, %v773
      %v775 = vpop.f32.mrb[0].mxu0
      %776 = vdwg.mxu0
      %780 = vrot.lane.b32.xlu0 %v457, 96
      %v781 = vpop.permute.xlu0 %780
      %782 = vrot.lane.b32.xlu0 %v464, 96
      %v783 = vpop.permute.xlu0 %782
      %784 = vrot.lane.b32.xlu0 %v471, 96
      %v785 = vpop.permute.xlu0 %784
      %v789 = vadd.f32 %v755, %v781
      %v790 = vadd.f32 %v758, %v781
      %v791 = vadd.f32 %v763, %v783
      %v792 = vadd.f32 %v766, %v783
      %v793 = vadd.f32 %v771, %v785
      %v794 = vadd.f32 %v774, %v785
      %v795 = vlaneseq
      %v796 = vshrl.u32 %v795, 7
      %v797 = vsub.s32 4, %v796
      %v798 = vrot.slane %v275, %v797
      %v799 = vadd.f32 %v789, %v798
      %v800 = vadd.f32 %v790, %v798
      %v801 = vadd.f32 %v791, %v798
      %v802 = vadd.f32 %v792, %v798
      %v803 = vadd.f32 %v793, %v798
      %v804 = vadd.f32 %v794, %v798
      %v805 = vmax.f32 %v799, 0.0
      %v806 = vmax.f32 %v800, 0.0
      %v807 = vmax.f32 %v801, 0.0
      %v808 = vmax.f32 %v802, 0.0
      %v809 = vmax.f32 %v803, 0.0
      %v810 = vmax.f32 %v804, 0.0
      %v811 = vpack.c.bf16 %v806, %v805
      %v812 = vpack.c.bf16 %v808, %v807
      %v813 = vpack.c.bf16 %v810, %v809
      %s814 = scalar_lea.vmem %s4, 32
      %v815 = vld [vmem:[%s814] sm:$0xf]
      %v816 = vld [vmem:[%s814 + $0x4] sm:$0xf]
      %v817 = vld [vmem:[%s814 + $0x8] sm:$0xf]
      %v818 = vld [vmem:[%s814 + $0xc] sm:$0xf]
      %v819 = vlaneseq
      %v820 = vshrl.u32 %v819, 7
      %v821 = vsub.s32 5, %v820
      %v822 = vrot.slane %v275, %v821
      %v827 = vunpack.c.l.b16 %v815
      %v828 = vunpack.c.l.b16 %v816
      %v829 = vunpack.c.l.b16 %v817
      %v830 = vunpack.c.l.b16 %v818
      %v831 = vpack.c.b16 %v828, %v827
      %v832 = vpack.c.b16 %v830, %v829
      %v836 = vsel %vm309, %v811, 0
      %v839 = vsel %vm309, %v812, 0
      %v842 = vsel %vm309, %v813, 0
      %844 = vmatprep.subr.bf16.mxu0 0
      %845 = vmatpush1.bf16.msra.mxu0 %v831
      %846 = vmatprep.subr.bf16.mxu0 0
      %847 = vmatpush1.bf16.msra.mxu0 %v832
      %848 = vmatprep.subr.bf16.mxu0 0
      %849 = vmatpush1.bf16.msra.mxu0 0
      %850 = vmatprep.subr.bf16.mxu0 0
      %851 = vmatpush1.bf16.msra.mxu0 0
      %852 = vmatprep.subr.bf16.mxu0 0
      %853 = vmatpush1.bf16.msra.mxu0 0
      %854 = vmatprep.subr.bf16.mxu0 0
      %855 = vmatpush1.bf16.msra.mxu0 0
      %856 = vmatprep.subr.bf16.mxu0 0
      %857 = vmatpush1.bf16.msra.mxu0 0
      %858 = vmatprep.subr.bf16.mxu0 0
      %859 = vmatpush1.bf16.msra.mxu0 0
      %860 = vmatprep.subr.bf16.mxu0 0
      %861 = vmatpush1.bf16.msra.mxu0 0
      %862 = vmatprep.subr.bf16.mxu0 0
      %863 = vmatpush1.bf16.msra.mxu0 0
      %864 = vmatprep.subr.bf16.mxu0 0
      %865 = vmatpush1.bf16.msra.mxu0 0
      %866 = vmatprep.subr.bf16.mxu0 0
      %867 = vmatpush1.bf16.msra.mxu0 0
      %868 = vmatprep.subr.bf16.mxu0 0
      %869 = vmatpush1.bf16.msra.mxu0 0
      %870 = vmatprep.subr.bf16.mxu0 0
      %871 = vmatpush1.bf16.msra.mxu0 0
      %872 = vmatprep.subr.bf16.mxu0 0
      %873 = vmatpush1.bf16.msra.mxu0 0
      %874 = vmatprep.subr.bf16.mxu0 0
      %875 = vmatpush1.bf16.msra.mxu0 0
      %876 = vmatprep.mubr.bf16.mxu0 0
      %877 = vmatmul.mubr.bf16.gmra.mrb[0].mxu0 %v836
      %v878 = vpop.f32.mrb[0].mxu0
      %v879 = vadd.f32 %v822, %v878
      %v880 = vpop.f32.mrb[0].mxu0
      %v881 = vpop.f32.mrb[0].mxu0
      %v882 = vadd.f32 %v822, %v881
      %v883 = vpop.f32.mrb[0].mxu0
      %884 = vmatprep.mubr.bf16.mxu0 0
      %885 = vmatmul.mubr.bf16.gmra.mrb[0].mxu0 %v839
      %v886 = vpop.f32.mrb[0].mxu0
      %v887 = vadd.f32 %v822, %v886
      %v888 = vpop.f32.mrb[0].mxu0
      %v889 = vpop.f32.mrb[0].mxu0
      %v890 = vadd.f32 %v822, %v889
      %v891 = vpop.f32.mrb[0].mxu0
      %892 = vmatprep.mubr.bf16.mxu0 0
      %893 = vmatmul.mubr.bf16.gmra.mrb[0].mxu0 %v842
      %v894 = vpop.f32.mrb[0].mxu0
      %v895 = vadd.f32 %v822, %v894
      %v896 = vpop.f32.mrb[0].mxu0
      %v897 = vpop.f32.mrb[0].mxu0
      %v898 = vadd.f32 %v822, %v897
      %v899 = vpop.f32.mrb[0].mxu0
      %900 = vdwg.mxu0
      %v901 = vmax.f32 %v879, 0.0
      %v902 = vmax.f32 %v882, 0.0
      %v903 = vmax.f32 %v887, 0.0
      %v904 = vmax.f32 %v890, 0.0
      %v905 = vmax.f32 %v895, 0.0
      %v906 = vmax.f32 %v898, 0.0
      %v907 = vlaneseq
      %v908 = vshrl.u32 %v907, 7
      %v909 = vsub.s32 6, %v908
      %v910 = vrot.slane %v275, %v909
      %v911 = vmul.f32 %v901, %v910
      %v912 = vmul.f32 %v902, %v910
      %v913 = vmul.f32 %v903, %v910
      %v914 = vmul.f32 %v904, %v910
      %v915 = vmul.f32 %v905, %v910
      %v916 = vmul.f32 %v906, %v910
      %v917 = vsel %vm309, %v911, 0.0
      %918 = vadd.xlane.f32.xlu0 %v917
      %v919 = vpop.xlane.xlu0 %918
      %v920 = vsel %vm309, %v912, 0.0
      %921 = vadd.xlane.f32.xlu0 %v920
      %v922 = vpop.xlane.xlu0 %921
      %v923 = vsel %vm309, %v913, 0.0
      %924 = vadd.xlane.f32.xlu0 %v923
      %v925 = vpop.xlane.xlu0 %924
      %v926 = vsel %vm309, %v914, 0.0
      %927 = vadd.xlane.f32.xlu0 %v926
      %v928 = vpop.xlane.xlu0 %927
      %v929 = vsel %vm309, %v915, 0.0
      %930 = vadd.xlane.f32.xlu0 %v929
      %v931 = vpop.xlane.xlu0 %930
      %v932 = vsel %vm309, %v916, 0.0
      %933 = vadd.xlane.f32.xlu0 %v932
      %v934 = vpop.xlane.xlu0 %933
      %v935 = vadd.s32 %v391, 8
      %vm936 = vcmp.lt.s32.totalorder %v391, 10
      %vm937 = vcmp.lt.s32.totalorder %v935, 10
      %v938 = vsel %vm936, %v919, -inf
      %v939 = vsel %vm937, %v922, -inf
      %v940 = vsel %vm936, %v925, -inf
      %v941 = vsel %vm937, %v928, -inf
      %v942 = vsel %vm936, %v931, -inf
      %v943 = vsel %vm937, %v934, -inf
      %v944 = vmax.f32 %v938, %v939
      %v945 = vrot.slane %v944, 4
      %v946 = vmax.f32 %v944, %v945
      %v947 = vrot.slane %v946, 2
      %v948 = vmax.f32 %v946, %v947
      %v949 = vrot.slane %v948, 1
      %v950 = vmax.f32 %v948, %v949
      %v951 = vmax.f32 %v940, %v941
      %v952 = vrot.slane %v951, 4
      %v953 = vmax.f32 %v951, %v952
      %v954 = vrot.slane %v953, 2
      %v955 = vmax.f32 %v953, %v954
      %v956 = vrot.slane %v955, 1
      %v957 = vmax.f32 %v955, %v956
      %v958 = vmax.f32 %v942, %v943
      %v959 = vrot.slane %v958, 4
      %v960 = vmax.f32 %v958, %v959
      %v961 = vrot.slane %v960, 2
      %v962 = vmax.f32 %v960, %v961
      %v963 = vrot.slane %v962, 1
      %v964 = vmax.f32 %v962, %v963
      %v965 = vsub.f32 %v938, %v950
      %v966 = vsub.f32 %v939, %v950
      %v967 = vsub.f32 %v940, %v957
      %v968 = vsub.f32 %v941, %v957
      %v969 = vsub.f32 %v942, %v964
      %v970 = vsub.f32 %v943, %v964
      %v971 = vmul.f32 %v965, 1.442695
      %v972 = vpow.pop %v971
      %v973 = vmul.f32 %v966, 1.442695
      %v974 = vpow.pop %v973
      %v975 = vmul.f32 %v967, 1.442695
      %v976 = vpow.pop %v975
      %v977 = vmul.f32 %v968, 1.442695
      %v978 = vpow.pop %v977
      %v979 = vmul.f32 %v969, 1.442695
      %v980 = vpow.pop %v979
      %v981 = vmul.f32 %v970, 1.442695
      %v982 = vpow.pop %v981
      %v983 = vadd.f32 %v972, %v974
      %v984 = vrot.slane %v983, 4
      %v985 = vadd.f32 %v983, %v984
      %v986 = vrot.slane %v985, 2
      %v987 = vadd.f32 %v985, %v986
      %v988 = vrot.slane %v987, 1
      %v989 = vadd.f32 %v987, %v988
      %v990 = vadd.f32 %v976, %v978
      %v991 = vrot.slane %v990, 4
      %v992 = vadd.f32 %v990, %v991
      %v993 = vrot.slane %v992, 2
      %v994 = vadd.f32 %v992, %v993
      %v995 = vrot.slane %v994, 1
      %v996 = vadd.f32 %v994, %v995
      %v997 = vadd.f32 %v980, %v982
      %v998 = vrot.slane %v997, 4
      %v999 = vadd.f32 %v997, %v998
      %v1000 = vrot.slane %v999, 2
      %v1001 = vadd.f32 %v999, %v1000
      %v1002 = vrot.slane %v1001, 1
      %v1003 = vadd.f32 %v1001, %v1002
      %v1004 = vrcp.pop %v989
      %v1005 = vrcp.pop %v996
      %v1006 = vrcp.pop %v1003
      %v1007 = vmul.f32 %v972, %v1004
      %v1008 = vmul.f32 %v974, %v1004
      %v1009 = vmul.f32 %v976, %v1005
      %v1010 = vmul.f32 %v978, %v1005
      %v1011 = vmul.f32 %v980, %v1006
      %v1012 = vmul.f32 %v982, %v1006
      %v1013 = vmul.f32 %v1007, %v685
      %v1014 = vmul.f32 %v1008, %v686
      %v1015 = vmul.f32 %v1009, %v687
      %v1016 = vmul.f32 %v1010, %v688
      %v1017 = vmul.f32 %v1011, %v689
      %v1018 = vmul.f32 %v1012, %v690
      %v1019 = vsel %vm309, %v1013, 0.0
      %v1020 = vsel %vm309, %v1014, 0.0
      %v1021 = vadd.f32 %v1019, %v1020
      %v1022 = vrot.slane %v1021, 4
      %v1023 = vadd.f32 %v1021, %v1022
      %v1024 = vrot.slane %v1023, 2
      %v1025 = vadd.f32 %v1023, %v1024
      %v1026 = vrot.slane %v1025, 1
      %v1027 = vadd.f32 %v1025, %v1026
      %v1028 = vsel %vm309, %v1015, 0.0
      %v1029 = vsel %vm309, %v1016, 0.0
      %v1030 = vadd.f32 %v1028, %v1029
      %v1031 = vrot.slane %v1030, 4
      %v1032 = vadd.f32 %v1030, %v1031
      %v1033 = vrot.slane %v1032, 2
      %v1034 = vadd.f32 %v1032, %v1033
      %v1035 = vrot.slane %v1034, 1
      %v1036 = vadd.f32 %v1034, %v1035
      %v1037 = vsel %vm309, %v1017, 0.0
      %v1038 = vsel %vm309, %v1018, 0.0
      %v1039 = vadd.f32 %v1037, %v1038
      %v1040 = vrot.slane %v1039, 4
      %v1041 = vadd.f32 %v1039, %v1040
      %v1042 = vrot.slane %v1041, 2
      %v1043 = vadd.f32 %v1041, %v1042
      %v1044 = vrot.slane %v1043, 1
      %v1045 = vadd.f32 %v1043, %v1044
      %vm1049 = vcmask 1041409
      %v1050 = vsel %vm1049, %v1036, %v1027
      %vm1051 = vcmask 1042434
      %v1052 = vsel %vm1051, %v1045, %v1050
      %vm1054 = vcmask 256000
      %1055 = vst.msk [vmem:[%s273] sm:$0x7] %vm1054, %v1052
      %p1056 = scmp.lt.s32.totalorder %s17, 1
      %s1057 = scalar_select %p1056, %s17, 1
      %s1058 = smul.addr %s1057, 4
      %s1059 = scalar_lea.vmem %s6, %s1058
      // Predicated region
      $region45: #{tpu_custom_call.1} parent=43 // pred_check
        %p1060 = pneg %p171
      $region46: #{tpu_custom_call.1} parent=43 // pred_check_branch
        %1062 = sbr.rel (%p1060) target = $region48
      $region47: #{tpu_custom_call.1} parent=43 // pred_region
        _
      $region48: #{tpu_custom_call.1} parent=43 // pred_fallthru
        _
    $region44: #{tpu_custom_call.1} parent=5 // pred_fallthru
      _
    %p1063 = scmp.le.s32.totalorder 2, %s12
    // Predicated region
    $region49: #{tpu_custom_call.1} parent=5 // pred_check
      %p1064 = pneg %p1063
    $region50: #{tpu_custom_call.1} parent=5 // pred_check_branch
      %1066 = sbr.rel (%p1064) target = $region52
    $region51: #{tpu_custom_call.1} parent=5 // pred_region
      %s1067 = ssub.s32 %s12, 2
      // Predicated region
      $region53: #{tpu_custom_call.1} parent=51 // pred_check
        %p1068 = pneg %p177
      $region54: #{tpu_custom_call.1} parent=51 // pred_check_branch
        %1070 = sbr.rel (%p1068) target = $region56
      $region55: #{tpu_custom_call.1} parent=51 // pred_region
        %p1071 = scmp.lt.s32.totalorder %s18, 1
        %s1072 = scalar_select %p1071, %s18, 1
        %s1073 = smul.addr %s1072, 4
        %s1074 = scalar_lea.vmem %s6, %s1073
      $region56: #{tpu_custom_call.1} parent=51 // pred_fallthru
        _
    $region52: #{tpu_custom_call.1} parent=5 // pred_fallthru
      _
  $region6: #{tpu_custom_call.1} parent=0 // loop_footer
    %s16 = sadd.s32 1, %s12
  $region7: #{tpu_custom_call.1} parent=0 // loop_footer_branch
    %11 = sbr.rel target = $region3
  $region8: #{tpu_custom_call.1} parent=0 // loop_exit
    _

</llo_original>
